<compile_context>
chip_gen: v6e
topology: v6e:2x2x1
jax: 0.10.0
libtpu: 0.0.40
codegen_flags: <defaults>
</compile_context>

<pallas_src>
import jax
import jax.numpy as jnp
from jax.experimental import pallas as pl
from jax.experimental.pallas import tpu as pltpu


# -----------------------------------------------------------------------------
# Pallas kernels (fused synthetic model + CFG blend, elementwise)
# -----------------------------------------------------------------------------
def _cfg_kernel_mj(bias_ref, x_ref, wm_ref, wj_ref, om_ref, oj_ref):
    """out_m = tanh(x)*w_m + bias[b] ; out_j = tanh(x)*w_j + bias[b].

    bias_ref : (B,) f32 in SMEM (whole array, scalar-indexed by batch)
    x_ref    : (ct, st) block of x[b]  (channels x spatial lanes)
    w*_ref   : (ct, 1) per-channel weight (lane-broadcast)
    """
    b = pl.program_id(0)
    bias = bias_ref[b]
    t = jnp.tanh(x_ref[...].astype(jnp.float32))     # single EUP pass, shared by m and j
    om_ref[...] = (t * wm_ref[...] + bias).astype(om_ref.dtype)
    oj_ref[...] = (t * wj_ref[...] + bias).astype(oj_ref.dtype)


def _cfg_kernel_one(bias_ref, x_ref, w_ref, o_ref):
    b = pl.program_id(0)
    t = jnp.tanh(x_ref[...].astype(jnp.float32))
    o_ref[...] = (t * w_ref[...] + bias_ref[b]).astype(o_ref.dtype)


# -----------------------------------------------------------------------------
# Tile policy: byte-budget driven, lane-dense, >= 2 grid steps.
# -----------------------------------------------------------------------------
def _choose_tiles(B, C, HWp, itemsize):
    sub = max(8, 32 // itemsize)                 # sublane granularity: 8 f32 / 16 bf16
    budget = 2 * 1024 * 1024                     # ~2 MiB of x per block:
    #   (1 input + 2 outputs) * 2 (double-buffer) * 2 MiB ~= 12 MiB VMEM worst case,
    #   safe on v5e (16 MiB default scoped) and v7x (64 MiB physical).
    max_ct = max(sub, (budget // max(1, HWp * itemsize)) // sub * sub)
    ct = C if C <= max_ct else max_ct            # full-C block bypasses the sublane rule
    st = HWp
    if ct * st * itemsize > budget:              # huge spatial: shrink lanes, 128-multiples
        max_st = max(128, (budget // max(1, ct * itemsize)) // 128 * 128)
        st = HWp if HWp <= max_st else max_st
    # Force >= 2 grid steps so the "parallel" axes shard across v7x's 2 TCs and the
    # auto-pipeline can overlap DMA-in(i+1) / tanh(i) / DMA-out(i-1).
    steps = B * (-(-C // ct)) * (-(-HWp // st))
    if steps < 2:
        if HWp >= 256:
            st = ((HWp // 2 + 127) // 128) * 128
        elif C >= 2 * sub:
            ct = ((C // 2 + sub - 1) // sub) * sub
    return ct, st


# -----------------------------------------------------------------------------
# pallas_call wrapper
# -----------------------------------------------------------------------------
def _launch_fused(x3, w_cols, bias_eff):
    """x3: (B, C, HWp) with HWp % 128 == 0; w_cols: list of (C,1) f32; bias_eff: (B,) f32."""
    B, C, HWp = x3.shape
    n_out = len(w_cols)
    itemsize = jnp.dtype(x3.dtype).itemsize
    ct, st = _choose_tiles(B, C, HWp, itemsize)
    grid = (B, pl.cdiv(C, ct), pl.cdiv(HWp, st))

    x_spec = pl.BlockSpec((None, ct, st), lambda b, i, j: (b, i, j))
    w_spec = pl.BlockSpec((ct, 1), lambda b, i, j: (i, 0))
    bias_spec = pl.BlockSpec(memory_space=pltpu.MemorySpace.SMEM)   # whole (B,) array in SMEM
    out_spec = pl.BlockSpec((None, ct, st), lambda b, i, j: (b, i, j))

    if n_out == 2:
        kernel = _cfg_kernel_mj
        out_shape = (jax.ShapeDtypeStruct((B, C, HWp), x3.dtype),
                     jax.ShapeDtypeStruct((B, C, HWp), x3.dtype))
        out_specs = (out_spec, out_spec)
    else:
        kernel = _cfg_kernel_one
        out_shape = jax.ShapeDtypeStruct((B, C, HWp), x3.dtype)
        out_specs = out_spec

    elems = B * C * HWp
    cost = pl.CostEstimate(
        flops=2 * n_out * elems,                 # mul + add per output element
        transcendentals=elems,                   # one tanh per input element
        bytes_accessed=(1 + n_out) * elems * itemsize + B * 4 + n_out * C * 4)

    outs = pl.pallas_call(
        kernel,
        out_shape=out_shape,
        grid=grid,
        in_specs=[bias_spec, x_spec] + [w_spec] * n_out,
        out_specs=out_specs,
        compiler_params=pltpu.CompilerParams(
            dimension_semantics=("parallel", "parallel", "parallel"),
            vmem_limit_bytes=32 * 1024 * 1024),
        cost_estimate=cost,
    )(bias_eff, x3, *w_cols)

    return outs if n_out == 2 else (outs,)


# -----------------------------------------------------------------------------
# Synthetic inner model parameters (`self.model` in the PyTorch code is arbitrary;
# here it is a deterministic synthetic model: tanh(x)*w_channel + conditioning bias,
# where force_mask=True drops the text-conditioning term).
# -----------------------------------------------------------------------------
def make_params(C, E):
    w_ch_m = 0.5 + 0.1 * jnp.arange(C, dtype=jnp.float32)      # (C,)
    w_ch_j = 1.0 - 0.05 * jnp.arange(C, dtype=jnp.float32)     # (C,)
    w_text = jnp.linspace(-0.2, 0.2, E, dtype=jnp.float32)     # (E,)
    return {"w_ch_m": w_ch_m, "w_ch_j": w_ch_j, "w_text": w_text}


# -----------------------------------------------------------------------------
# ClassifierFreeSampleModel.forward equivalent (fully fused)
# -----------------------------------------------------------------------------
def classifier_free_sample_forward(params, x, timesteps, y=None,
                                   return_m=True, return_j=False):
    B, C, H, W = x.shape

    # Tiny per-batch scalar glue (not the hot path).
    text_bias = y["enc_text"].astype(jnp.float32) @ params["w_text"]   # (B,)
    t_bias = jnp.sin(timesteps.astype(jnp.float32) * 0.1)              # (B,)

    if "force_mask" in y:
        # out = model(..., force_mask=True)  -> bias = t_bias only
        bias_eff = t_bias
    elif "scale" in y:
        # uncond + s*(cond - uncond) == tanh(x)*w + t_bias + s*text_bias (algebraic fusion;
        # re-associates FP adds -> matches the 3-call reference to ~1e-6, not bitwise)
        s = y["scale"].reshape(-1).astype(jnp.float32)                 # == .view(-1,1,1,1)
        bias_eff = t_bias + s * text_bias
    else:
        bias_eff = t_bias + text_bias
    bias_eff = bias_eff.astype(jnp.float32)

    which = []
    if return_m:
        which.append("w_ch_m")
    if return_j:
        which.append("w_ch_j")
    if not which:
        return {}

    # Lane-dense layout: (B, C, H, W) -> (B, C, HWp) with HWp a multiple of 128.
    HW = H * W
    HWp = ((HW + 127) // 128) * 128
    x3 = x.reshape(B, C, HW)
    if HWp != HW:
        x3 = jnp.pad(x3, ((0, 0), (0, 0), (0, HWp - HW)))

    w_cols = [params[k].astype(jnp.float32).reshape(C, 1) for k in which]

    outs = _launch_fused(x3, w_cols, bias_eff)

    result = {}
    idx = 0
    for name, flag in (("m", return_m), ("j", return_j)):
        if flag:
            o = outs[idx]
            if HWp != HW:
                o = o[:, :, :HW]
            result[name] = o.reshape(B, C, H, W)
            idx += 1
    return result


# -----------------------------------------------------------------------------
# Pure-JAX reference following the ORIGINAL 3-call structure (model cond, model
# uncond, explicit CFG blend).
# -----------------------------------------------------------------------------
def _ref_model(params, x, timesteps, enc_text, wkey, force_mask):
    B, C, H, W = x.shape
    text_bias = enc_text @ params["w_text"]
    t_bias = jnp.sin(timesteps.astype(jnp.float32) * 0.1)
    bias = t_bias if force_mask else t_bias + text_bias
    w = params[wkey].reshape(1, C, 1, 1)
    return jnp.tanh(x) * w + bias.reshape(B, 1, 1, 1)


def _ref_forward(params, x, timesteps, y, return_m=True, return_j=False):
    out = {}
    if "force_mask" in y:
        if return_m:
            out["m"] = _ref_model(params, x, timesteps, y["enc_text"], "w_ch_m", True)
        if return_j:
            out["j"] = _ref_model(params, x, timesteps, y["enc_text"], "w_ch_j", True)
        return out
    if return_m:
        out["m"] = _ref_model(params, x, timesteps, y["enc_text"], "w_ch_m", False)
    if return_j:
        out["j"] = _ref_model(params, x, timesteps, y["enc_text"], "w_ch_j", False)
    if "scale" in y:
        s = y["scale"].reshape(-1, 1, 1, 1).astype(jnp.float32)
        for k, wkey in (("m", "w_ch_m"), ("j", "w_ch_j")):
            if k in out:
                unc = _ref_model(params, x, timesteps, y["enc_text"], wkey, True)
                out[k] = unc + s * (out[k] - unc)
    return out


# -----------------------------------------------------------------------------
if __name__ == "__main__":
    B, C, H, W, E = 2, 4, 16, 16, 32

    key = jax.random.PRNGKey(0)
    kx, kt, ke, ks = jax.random.split(key, 4)
    x = jax.random.normal(kx, (B, C, H, W), dtype=jnp.float32)
    timesteps = jax.random.randint(kt, (B,), 0, 1000, dtype=jnp.int32)
    enc_text = jax.random.normal(ke, (B, E), dtype=jnp.float32)
    scale = 1.0 + jax.random.uniform(ks, (B,), dtype=jnp.float32) * 4.0

    params = make_params(C, E)

    # --- CFG branch ('scale' present): single fused kernel produces both m and j ---
    y = {"enc_text": enc_text, "scale": scale}
    out = classifier_free_sample_forward(params, x, timesteps, y,
                                         return_m=True, return_j=True)
    jax.block_until_ready(out["m"])
    jax.block_until_ready(out["j"])
    ref = _ref_forward(params, x, timesteps, y, return_m=True, return_j=True)
    assert jnp.allclose(out["m"], ref["m"], rtol=1e-5, atol=1e-5)
    assert jnp.allclose(out["j"], ref["j"], rtol=1e-5, atol=1e-5)

    # --- force_mask branch (no CFG blend, single output) ---
    y_fm = {"enc_text": enc_text, "force_mask": True}
    out_fm = classifier_free_sample_forward(params, x, timesteps, y_fm,
                                            return_m=True, return_j=False)
    jax.block_until_ready(out_fm["m"])
    ref_fm = _ref_forward(params, x, timesteps, y_fm, return_m=True, return_j=False)
    assert jnp.allclose(out_fm["m"], ref_fm["m"], rtol=1e-5, atol=1e-5)

    # --- conditional-only branch (no scale, no force_mask) ---
    y_c = {"enc_text": enc_text}
    out_c = classifier_free_sample_forward(params, x, timesteps, y_c,
                                           return_m=True, return_j=False)
    jax.block_until_ready(out_c["m"])
    ref_c = _ref_forward(params, x, timesteps, y_c, return_m=True, return_j=False)
    assert jnp.allclose(out_c["m"], ref_c["m"], rtol=1e-5, atol=1e-5)

    # --- bf16 storage path (halves HBM traffic; compute stays f32 in-kernel) ---
    x_bf = x.astype(jnp.bfloat16)
    out_bf = classifier_free_sample_forward(params, x_bf, timesteps, y,
                                            return_m=True, return_j=True)
    jax.block_until_ready(out_bf["m"])
    ref_bf = _ref_forward(params, x_bf.astype(jnp.float32), timesteps, y,
                          return_m=True, return_j=True)
    assert out_bf["m"].dtype == jnp.bfloat16
    assert jnp.allclose(out_bf["m"].astype(jnp.float32), ref_bf["m"], rtol=2e-2, atol=5e-2)
    assert jnp.allclose(out_bf["j"].astype(jnp.float32), ref_bf["j"], rtol=2e-2, atol=5e-2)

    print("KERNEL_OK")
</pallas_src>

<mosaic_0001>
module attributes {stable_mosaic.version = 11 : i64} {
  func.func @_cfg_kernel_mj(%arg0: i32, %arg1: i32, %arg2: i32, %arg3: memref<2xf32, #tpu.memory_space<smem>>, %arg4: memref<1x4x256xf32, #tpu.memory_space<vmem>>, %arg5: memref<4x1xf32, #tpu.memory_space<vmem>>, %arg6: memref<4x1xf32, #tpu.memory_space<vmem>>, %arg7: memref<1x4x256xf32, #tpu.memory_space<vmem>>, %arg8: memref<1x4x256xf32, #tpu.memory_space<vmem>>) attributes {dimension_semantics = [#tpu.dimension_semantics<parallel>, #tpu.dimension_semantics<parallel>, #tpu.dimension_semantics<parallel>], iteration_bounds = array<i64: 2, 1, 1>, scalar_prefetch = 0 : i64, scratch_operands = 0 : i64, tpu.core_type = #tpu.core_type<tc>, window_params = [{transform_indices = @transform_0, window_bounds = array<i64: 2>}, {transform_indices = @transform_1, window_bounds = array<i64: 1, 4, 256>}, {transform_indices = @transform_2, window_bounds = array<i64: 4, 1>}, {transform_indices = @transform_3, window_bounds = array<i64: 4, 1>}, {transform_indices = @transform_4, window_bounds = array<i64: 1, 4, 256>}, {transform_indices = @transform_5, window_bounds = array<i64: 1, 4, 256>}]} {
    %0 = arith.index_cast %arg0 : i32 to index
    %1 = memref.load %arg3[%0] : memref<2xf32, #tpu.memory_space<smem>>
    %c0 = arith.constant 0 : index
    %c0_0 = arith.constant 0 : index
    %c0_1 = arith.constant 0 : index
    %2 = vector.load %arg4[%c0, %c0_0, %c0_1] : memref<1x4x256xf32, #tpu.memory_space<vmem>>, vector<1x4x256xf32>
    %3 = vector.shape_cast %2 : vector<1x4x256xf32> to vector<4x256xf32>
    %4 = math.tanh %3 : vector<4x256xf32>
    %c0_2 = arith.constant 0 : index
    %c0_3 = arith.constant 0 : index
    %5 = vector.load %arg5[%c0_2, %c0_3] : memref<4x1xf32, #tpu.memory_space<vmem>>, vector<4x1xf32>
    %6 = vector.broadcast %5 : vector<4x1xf32> to vector<4x256xf32>
    %7 = arith.mulf %4, %6 : vector<4x256xf32>
    %8 = vector.broadcast %1 : f32 to vector<4x256xf32>
    %9 = arith.addf %7, %8 : vector<4x256xf32>
    %c0_4 = arith.constant 0 : index
    %c0_5 = arith.constant 0 : index
    %c0_6 = arith.constant 0 : index
    %10 = vector.load %arg7[%c0_4, %c0_5, %c0_6] : memref<1x4x256xf32, #tpu.memory_space<vmem>>, vector<1x4x256xf32>
    %11 = vector.shape_cast %10 : vector<1x4x256xf32> to vector<4x256xf32>
    %12 = vector.shape_cast %9 : vector<4x256xf32> to vector<1x4x256xf32>
    tpu.vector_store %arg7[%c0_4, %c0_5, %c0_6], %12 {strides = array<i32>} : memref<1x4x256xf32, #tpu.memory_space<vmem>>, vector<1x4x256xf32>,
    %c0_7 = arith.constant 0 : index
    %c0_8 = arith.constant 0 : index
    %13 = vector.load %arg6[%c0_7, %c0_8] : memref<4x1xf32, #tpu.memory_space<vmem>>, vector<4x1xf32>
    %14 = vector.broadcast %13 : vector<4x1xf32> to vector<4x256xf32>
    %15 = arith.mulf %4, %14 : vector<4x256xf32>
    %16 = vector.broadcast %1 : f32 to vector<4x256xf32>
    %17 = arith.addf %15, %16 : vector<4x256xf32>
    %c0_9 = arith.constant 0 : index
    %c0_10 = arith.constant 0 : index
    %c0_11 = arith.constant 0 : index
    %18 = vector.load %arg8[%c0_9, %c0_10, %c0_11] : memref<1x4x256xf32, #tpu.memory_space<vmem>>, vector<1x4x256xf32>
    %19 = vector.shape_cast %18 : vector<1x4x256xf32> to vector<4x256xf32>
    %20 = vector.shape_cast %17 : vector<4x256xf32> to vector<1x4x256xf32>
    tpu.vector_store %arg8[%c0_9, %c0_10, %c0_11], %20 {strides = array<i32>} : memref<1x4x256xf32, #tpu.memory_space<vmem>>, vector<1x4x256xf32>,
    return
  }
  func.func @transform_0(%arg0: i32, %arg1: i32, %arg2: i32) -> i32 {
    %c0_i32 = arith.constant 0 : i32
    %c0_i32_0 = arith.constant 0 : i32
    return %c0_i32 : i32
  }
  func.func @transform_1(%arg0: i32, %arg1: i32, %arg2: i32) -> (i32, i32, i32) {
    %c0_i32 = arith.constant 0 : i32
    return %arg0, %arg1, %arg2 : i32, i32, i32
  }
  func.func @transform_2(%arg0: i32, %arg1: i32, %arg2: i32) -> (i32, i32) {
    %c0_i32 = arith.constant 0 : i32
    %c0_i32_0 = arith.constant 0 : i32
    return %arg1, %c0_i32 : i32, i32
  }
  func.func @transform_3(%arg0: i32, %arg1: i32, %arg2: i32) -> (i32, i32) {
    %c0_i32 = arith.constant 0 : i32
    %c0_i32_0 = arith.constant 0 : i32
    return %arg1, %c0_i32 : i32, i32
  }
  func.func @transform_4(%arg0: i32, %arg1: i32, %arg2: i32) -> (i32, i32, i32) {
    %c0_i32 = arith.constant 0 : i32
    return %arg0, %arg1, %arg2 : i32, i32, i32
  }
  func.func @transform_5(%arg0: i32, %arg1: i32, %arg2: i32) -> (i32, i32, i32) {
    %c0_i32 = arith.constant 0 : i32
    return %arg0, %arg1, %arg2 : i32, i32, i32
  }
}

</mosaic_0001>

<llo_original>
// kernel: tpu_custom_call.1
$region0: #{tpu_custom_call.1}
  #allocation0 [shape = 'u32[]', space=smem, size = 0x4, offset = 0x4, fixed_abs, tag = 'smem constant byte address 0x4 - core index']
  #allocation1 [shape = 'u32[144,128]{1,0:T(1,128)}', space=vmem, size = 0x12000, scoped, tag = 'internal scratch']
  %s0 = inlined_call_operand.vmem [shape: f32[2], index: 0, kind: input, shape index: {}]
  %s1 = inlined_call_operand.hbm [shape: f32[2,4,256], index: 1, kind: input, shape index: {}]
  %s2 = inlined_call_operand.vmem [shape: f32[4,1], index: 2, kind: input, shape index: {}]
  %s3 = inlined_call_operand.vmem [shape: f32[4,1], index: 3, kind: input, shape index: {}]
  %s4 = inlined_call_operand.hbm [shape: f32[2,4,256], index: 4, kind: output, shape index: {0}]
  %s5 = inlined_call_operand.hbm [shape: f32[2,4,256], index: 5, kind: output, shape index: {1}]
  %6 = xla_tuple %s4, %s5
  %s7 = sld [smem:[#allocation0]]
  $region65: #{tpu_custom_call.1} parent=0
    _
  %s9 = ssub.s32 1, %s7
  %s10 = scalar_select 0, %s9, %s7
  $region1: #{tpu_custom_call.1} parent=0
    #allocation2 [shape = 'u8[512]{0}', space=smem, size = 0x200, scoped, tag = 'input window, operand 0, single buffered']
    #allocation3 [shape = 's32[2]{0}', space=sflag, size = 0x8, scoped, tag = 'scoped memory for tpu_custom_call.1']
    #allocation4 [shape = 's32[2]{0}', space=sflag, size = 0x8, scoped, tag = 'scoped memory for tpu_custom_call.1']
    #allocation5 [shape = 's32[2]{0}', space=sflag, size = 0x8, scoped, tag = 'scoped memory for tpu_custom_call.1']
    #allocation6 [shape = 'u8[8192]{0}', space=vmem, size = 0x2000, scoped, tag = 'input window, operand 1']
    #allocation7 [shape = 'u8[8192]{0}', space=vmem, size = 0x2000, scoped, tag = 'output window, operand 0']
    #allocation8 [shape = 'u8[8192]{0}', space=vmem, size = 0x2000, scoped, tag = 'output window, operand 1']
    #allocation9 [shape = 's32[2]{0}', space=sflag, size = 0x8, scoped, tag = 'scoped memory for tpu_custom_call.1']
    %11 = vsyncpa [#allocation5], 0
    %12 = vsyncpa [#allocation3], 0
    %s13 = scalar_lea.sflag [#allocation3], 1
    %14 = vsyncpa %s13, 0
    %15 = vsyncpa [#allocation4], 0
    %s16 = scalar_lea.sflag [#allocation4], 1
    %17 = vsyncpa %s16, 0
    %18 = vsyncpa [#allocation9], 0
    %s19 = scalar_lea.sflag [#allocation9], 1
    %20 = vsyncpa %s19, 0
    loop: start=0, step=1, limit=4
    $region2: #{tpu_custom_call.1} parent=1 // loop_pre_header
      _
    $region3: #{tpu_custom_call.1} parent=1 // loop_header
      %s22 = sphi 0, %s26
      %p23 = scmp.ge.s32.totalorder %s22, 4
      %s29 = sphi 0, %s48
      %s30 = sphi 0, %s44
      %s31 = sphi 0, %s40
      %s32 = sphi 0, %s29
      %s33 = sphi 0, %s30
      %s34 = sphi 0, %s31
      %s35 = sphi 0, %s32
      %s36 = sphi 0, %s33
      %s37 = sphi 0, %s34
      %s49 = sphi 0, %s49
      %s51 = sphi 0, %s49
      %s52 = sphi 0, %s51
      %s66 = sphi 0, %s52
      %s76 = sphi 0, %s78
      %s79 = sphi 0, %s76
      %s80 = sphi 0, %s79
      %s96 = sphi 0, %s80
      %s102 = sphi 0, %s104
      %s105 = sphi 0, %s102
      %s106 = sphi 0, %s105
      %s122 = sphi 0, %s106
      %s128 = sphi 0, %s130
      %s131 = sphi 0, %s128
      %s132 = sphi 0, %s131
      %s148 = sphi 0, %s132
      %s158 = sphi 0, %s160
      %s161 = sphi 0, %s158
      %s162 = sphi 0, %s161
      %s178 = sphi 0, %s162
      %s188 = sphi 0, %s190
      %s191 = sphi 0, %s188
      %s192 = sphi 0, %s191
      %s208 = sphi 0, %s192
    $region4: #{tpu_custom_call.1} parent=1 // loop_header_branch
      %25 = sbr.rel (%p23) target = $region8
    $region5: #{tpu_custom_call.1} parent=1 // loop_body
      %s27 = ssub.s32 %s22, 1
      %s28 = ssub.s32 %s22, 2
      %s38 = sadd.s32 1, %s31
      %p39 = scmp.ge.s32.totalorder %s38, 1
      %s40 = scalar_select %p39, 0, %s38
      %s41 = sadd.s32 1, %s30
      %s42 = scalar_select %p39, %s41, %s30
      %p43 = scmp.ge.s32.totalorder %s42, 1
      %s44 = scalar_select %p43, 0, %s42
      %s45 = sadd.s32 1, %s29
      %s46 = scalar_select %p43, %s45, %s29
      %p47 = scmp.ge.s32.totalorder %s46, 2
      %s48 = scalar_select %p47, 0, %s46
      %s50 = sadd.s32 %s49, 1
      %p53 = scmp.eq.s32.totalorder %s22, 1
      %p54 = scmp.ne.s32.totalorder %s49, %s51
      %p55 = scmp.eq.s32.totalorder %s22, 0
      %p56 = por %p54, %p55
      %p57 = scmp.ne.s32.totalorder %s49, %s51
      %p58 = scmp.eq.s32.totalorder %s27, 1
      %p59 = por %p57, %p58
      %p60 = scmp.ne.s32.totalorder %s51, %s52
      %p61 = scmp.eq.s32.totalorder %s27, 0
      %p62 = por %p60, %p61
      %p63 = scmp.ne.s32.totalorder %s51, %s52
      %p64 = scmp.eq.s32.totalorder %s28, 1
      %p65 = por %p63, %p64
      %p67 = scmp.ne.s32.totalorder %s52, %s66
      %p68 = scmp.eq.s32.totalorder %s28, 0
      %p69 = por %p67, %p68
      %s70 = ssub.s32 %s29, %s48
      %s71 = ssub.s32 %s30, %s44
      %s72 = sor.u32 %s70, %s71
      %s73 = ssub.s32 %s31, %s40
      %s74 = sor.u32 %s72, %s73
      %p75 = scmp.eq.s32.totalorder %s74, 0
      %s77 = sadd.s32 %s76, 1
      %s78 = scalar_select %p75, %s76, %s77
      %p81 = pneg %p75
      %p82 = scmp.eq.s32.totalorder %s22, 1
      %p83 = por %p81, %p82
      %p84 = scmp.ne.s32.totalorder %s76, %s79
      %p85 = scmp.eq.s32.totalorder %s22, 0
      %p86 = por %p84, %p85
      %p87 = scmp.ne.s32.totalorder %s76, %s79
      %p88 = scmp.eq.s32.totalorder %s27, 1
      %p89 = por %p87, %p88
      %p90 = scmp.ne.s32.totalorder %s79, %s80
      %p91 = scmp.eq.s32.totalorder %s27, 0
      %p92 = por %p90, %p91
      %p93 = scmp.ne.s32.totalorder %s79, %s80
      %p94 = scmp.eq.s32.totalorder %s28, 1
      %p95 = por %p93, %p94
      %p97 = scmp.ne.s32.totalorder %s80, %s96
      %p98 = scmp.eq.s32.totalorder %s28, 0
      %p99 = por %p97, %p98
      %s100 = ssub.s32 %s30, %s44
      %p101 = scmp.eq.s32.totalorder %s100, 0
      %s103 = sadd.s32 %s102, 1
      %s104 = scalar_select %p101, %s102, %s103
      %p107 = pneg %p101
      %p108 = scmp.eq.s32.totalorder %s22, 1
      %p109 = por %p107, %p108
      %p110 = scmp.ne.s32.totalorder %s102, %s105
      %p111 = scmp.eq.s32.totalorder %s22, 0
      %p112 = por %p110, %p111
      %p113 = scmp.ne.s32.totalorder %s102, %s105
      %p114 = scmp.eq.s32.totalorder %s27, 1
      %p115 = por %p113, %p114
      %p116 = scmp.ne.s32.totalorder %s105, %s106
      %p117 = scmp.eq.s32.totalorder %s27, 0
      %p118 = por %p116, %p117
      %p119 = scmp.ne.s32.totalorder %s105, %s106
      %p120 = scmp.eq.s32.totalorder %s28, 1
      %p121 = por %p119, %p120
      %p123 = scmp.ne.s32.totalorder %s106, %s122
      %p124 = scmp.eq.s32.totalorder %s28, 0
      %p125 = por %p123, %p124
      %s126 = ssub.s32 %s30, %s44
      %p127 = scmp.eq.s32.totalorder %s126, 0
      %s129 = sadd.s32 %s128, 1
      %s130 = scalar_select %p127, %s128, %s129
      %p133 = pneg %p127
      %p134 = scmp.eq.s32.totalorder %s22, 1
      %p135 = por %p133, %p134
      %p136 = scmp.ne.s32.totalorder %s128, %s131
      %p137 = scmp.eq.s32.totalorder %s22, 0
      %p138 = por %p136, %p137
      %p139 = scmp.ne.s32.totalorder %s128, %s131
      %p140 = scmp.eq.s32.totalorder %s27, 1
      %p141 = por %p139, %p140
      %p142 = scmp.ne.s32.totalorder %s131, %s132
      %p143 = scmp.eq.s32.totalorder %s27, 0
      %p144 = por %p142, %p143
      %p145 = scmp.ne.s32.totalorder %s131, %s132
      %p146 = scmp.eq.s32.totalorder %s28, 1
      %p147 = por %p145, %p146
      %p149 = scmp.ne.s32.totalorder %s132, %s148
      %p150 = scmp.eq.s32.totalorder %s28, 0
      %p151 = por %p149, %p150
      %s152 = ssub.s32 %s29, %s48
      %s153 = ssub.s32 %s30, %s44
      %s154 = sor.u32 %s152, %s153
      %s155 = ssub.s32 %s31, %s40
      %s156 = sor.u32 %s154, %s155
      %p157 = scmp.eq.s32.totalorder %s156, 0
      %s159 = sadd.s32 %s158, 1
      %s160 = scalar_select %p157, %s158, %s159
      %p163 = pneg %p157
      %p164 = scmp.eq.s32.totalorder %s22, 1
      %p165 = por %p163, %p164
      %p166 = scmp.ne.s32.totalorder %s158, %s161
      %p167 = scmp.eq.s32.totalorder %s22, 0
      %p168 = por %p166, %p167
      %p169 = scmp.ne.s32.totalorder %s158, %s161
      %p170 = scmp.eq.s32.totalorder %s27, 1
      %p171 = por %p169, %p170
      %p172 = scmp.ne.s32.totalorder %s161, %s162
      %p173 = scmp.eq.s32.totalorder %s27, 0
      %p174 = por %p172, %p173
      %p175 = scmp.ne.s32.totalorder %s161, %s162
      %p176 = scmp.eq.s32.totalorder %s28, 1
      %p177 = por %p175, %p176
      %p179 = scmp.ne.s32.totalorder %s162, %s178
      %p180 = scmp.eq.s32.totalorder %s28, 0
      %p181 = por %p179, %p180
      %s182 = ssub.s32 %s29, %s48
      %s183 = ssub.s32 %s30, %s44
      %s184 = sor.u32 %s182, %s183
      %s185 = ssub.s32 %s31, %s40
      %s186 = sor.u32 %s184, %s185
      %p187 = scmp.eq.s32.totalorder %s186, 0
      %s189 = sadd.s32 %s188, 1
      %s190 = scalar_select %p187, %s188, %s189
      %p193 = pneg %p187
      %p194 = scmp.eq.s32.totalorder %s22, 1
      %p195 = por %p193, %p194
      %p196 = scmp.ne.s32.totalorder %s188, %s191
      %p197 = scmp.eq.s32.totalorder %s22, 0
      %p198 = por %p196, %p197
      %p199 = scmp.ne.s32.totalorder %s188, %s191
      %p200 = scmp.eq.s32.totalorder %s27, 1
      %p201 = por %p199, %p200
      %p202 = scmp.ne.s32.totalorder %s191, %s192
      %p203 = scmp.eq.s32.totalorder %s27, 0
      %p204 = por %p202, %p203
      %p205 = scmp.ne.s32.totalorder %s191, %s192
      %p206 = scmp.eq.s32.totalorder %s28, 1
      %p207 = por %p205, %p206
      %p209 = scmp.ne.s32.totalorder %s192, %s208
      %p210 = scmp.eq.s32.totalorder %s28, 0
      %p211 = por %p209, %p210
      %p212 = scmp.le.s32.totalorder 1, %s22
      %p213 = scmp.lt.s32.totalorder %s22, 3
      %p214 = pnand %p212, %p213
      %p215 = pneg %p214
      // Predicated region
      $region9: #{tpu_custom_call.1} parent=5 // pred_check
        _
      $region10: #{tpu_custom_call.1} parent=5 // pred_check_branch
        %217 = sbr.rel (%p214) target = $region12
      $region11: #{tpu_custom_call.1} parent=5 // pred_region
        %s218 = ssub.s32 %s22, 1
        // Predicated region
        $region13: #{tpu_custom_call.1} parent=11 // pred_check
          %p219 = pneg %p62
        $region14: #{tpu_custom_call.1} parent=11 // pred_check_branch
          %221 = sbr.rel (%p219) target = $region16
        $region15: #{tpu_custom_call.1} parent=11 // pred_region
          %s223 = ssub.s32 16, 16
          %224 = vsyncadd [#allocation5], %s223
          %s226 = sshll.u32 %s0, 4
          %s227 = int_to_ptr.vmem [resolvable:$true] %s226
          %229 = dma.vmem_to_smem %s227, 16, [#allocation2], [#allocation5]
        $region16: #{tpu_custom_call.1} parent=11 // pred_fallthru
          _
        // Predicated region
        $region17: #{tpu_custom_call.1} parent=11 // pred_check
          %p230 = pneg %p118
        $region18: #{tpu_custom_call.1} parent=11 // pred_check_branch
          %232 = sbr.rel (%p230) target = $region20
        $region19: #{tpu_custom_call.1} parent=11 // pred_region
          %p233 = scmp.lt.s32.totalorder %s33, 0
          %s234 = scalar_select %p233, %s33, 0
          %s235 = smul.addr %s234, 4
          %s236 = scalar_lea.vmem %s2, %s235
        $region20: #{tpu_custom_call.1} parent=11 // pred_fallthru
          _
        // Predicated region
        $region21: #{tpu_custom_call.1} parent=11 // pred_check
          %p237 = pneg %p144
        $region22: #{tpu_custom_call.1} parent=11 // pred_check_branch
          %239 = sbr.rel (%p237) target = $region24
        $region23: #{tpu_custom_call.1} parent=11 // pred_region
          %p240 = scmp.lt.s32.totalorder %s33, 0
          %s241 = scalar_select %p240, %s33, 0
          %s242 = smul.addr %s241, 4
          %s243 = scalar_lea.vmem %s3, %s242
        $region24: #{tpu_custom_call.1} parent=11 // pred_fallthru
          _
      $region12: #{tpu_custom_call.1} parent=5 // pred_fallthru
        _
      %p244 = scmp.lt.s32.totalorder %s22, 2
      // Predicated region
      $region25: #{tpu_custom_call.1} parent=5 // pred_check
        %p245 = pneg %p244
      $region26: #{tpu_custom_call.1} parent=5 // pred_check_branch
        %247 = sbr.rel (%p245) target = $region28
      $region27: #{tpu_custom_call.1} parent=5 // pred_region
        // Predicated region
        $region29: #{tpu_custom_call.1} parent=27 // pred_check
          %p248 = pneg %p86
        $region30: #{tpu_custom_call.1} parent=27 // pred_check_branch
          %250 = sbr.rel (%p248) target = $region32
        $region31: #{tpu_custom_call.1} parent=27 // pred_region
          %s251 = sand.u32 %s76, 1
          %s252 = scalar_lea.sflag [#allocation3], %s251
          %s253 = sand.u32 %s76, 1
          %s254 = smul.addr %s253, 8
          %s255 = scalar_lea.vmem [#allocation6], %s254
          %s256 = smul.u32 2, %s31
          %s258 = ssub.s32 128, 128
          %259 = vsyncadd %s252, %s258
          %s260 = smul.addr %s30, 2
          %s261 = sadd.s32 %s256, %s260
          %s262 = smul.addr %s29, 2
          %s263 = sadd.s32 %s261, %s262
          %s264 = smul.addr %s263, 64
          %s265 = scalar_lea.hbm %s1, %s264
          %s267 = sshll.u32 %s255, 4
          %s268 = int_to_ptr.vmem [resolvable:$true] %s267
          %270 = dma.hbm_to_vmem [thread:$0]  %s265, 128, %s268, %s252
        $region32: #{tpu_custom_call.1} parent=27 // pred_fallthru
          _
      $region28: #{tpu_custom_call.1} parent=5 // pred_fallthru
        _
      %p271 = scmp.le.s32.totalorder 1, %s22
      %p272 = scmp.lt.s32.totalorder %s22, 3
      %p273 = pnand %p271, %p272
      %p274 = pneg %p273
      // Predicated region
      $region33: #{tpu_custom_call.1} parent=5 // pred_check
        _
      $region34: #{tpu_custom_call.1} parent=5 // pred_check_branch
        %276 = sbr.rel (%p273) target = $region36
      $region35: #{tpu_custom_call.1} parent=5 // pred_region
        %s277 = ssub.s32 %s22, 1
        // Predicated region
        $region37: #{tpu_custom_call.1} parent=35 // pred_check
          %p278 = pneg %p62
        $region38: #{tpu_custom_call.1} parent=35 // pred_check_branch
          %280 = sbr.rel (%p278) target = $region40
        $region39: #{tpu_custom_call.1} parent=35 // pred_region
          %281 = dma.done [#allocation5], 16
        $region40: #{tpu_custom_call.1} parent=35 // pred_fallthru
          _
        %s282 = sand.u32 %s79, 1
        %s283 = scalar_lea.sflag [#allocation3], %s282
        %s284 = sand.u32 %s79, 1
        %s285 = smul.addr %s284, 8
        %s286 = scalar_lea.vmem [#allocation6], %s285
        // Predicated region
        $region41: #{tpu_custom_call.1} parent=35 // pred_check
          %p287 = pneg %p92
        $region42: #{tpu_custom_call.1} parent=35 // pred_check_branch
          %289 = sbr.rel (%p287) target = $region44
        $region43: #{tpu_custom_call.1} parent=35 // pred_region
          %290 = dma.done %s283, 128
        $region44: #{tpu_custom_call.1} parent=35 // pred_fallthru
          _
        %291 = sfence
        %p292 = pneg %p62
        %p293 = pneg %p59
        %s294 = sand.u32 %s79, 1
        %s295 = scalar_lea.sflag [#allocation3], %s294
        %s296 = sand.u32 %s79, 1
        %s297 = smul.addr %s296, 8
        %s298 = scalar_lea.vmem [#allocation6], %s297
        %p299 = pneg %p92
        %p300 = pneg %p89
        %p301 = scmp.lt.s32.totalorder %s33, 0
        %s302 = scalar_select %p301, %s33, 0
        %s303 = smul.addr %s302, 4
        %s304 = scalar_lea.vmem %s2, %s303
        %p305 = pneg %p118
        %p306 = pneg %p115
        %p307 = scmp.lt.s32.totalorder %s33, 0
        %s308 = scalar_select %p307, %s33, 0
        %s309 = smul.addr %s308, 4
        %s310 = scalar_lea.vmem %s3, %s309
        %p311 = pneg %p144
        %p312 = pneg %p141
        %p313 = pneg %p174
        %p314 = pneg %p171
        %s315 = sand.u32 %s161, 1
        %s316 = scalar_lea.sflag [#allocation4], %s315
        %s317 = sand.u32 %s161, 1
        %s318 = smul.addr %s317, 8
        %s319 = scalar_lea.vmem [#allocation7], %s318
        %p320 = pneg %p204
        %p321 = pneg %p201
        %s322 = sand.u32 %s191, 1
        %s323 = scalar_lea.sflag [#allocation9], %s322
        %s324 = sand.u32 %s191, 1
        %s325 = smul.addr %s324, 8
        %s326 = scalar_lea.vmem [#allocation8], %s325
        %s327 = smul.u32 2, %s34
        %p328 = scmp.lt.s32.totalorder %s33, 0
        %s329 = scalar_select %p328, %s33, 0
        %s330 = smul.addr %s329, 4
        %s331 = scalar_lea.vmem %s2, %s330
        %p332 = scmp.lt.s32.totalorder %s33, 0
        %s333 = scalar_select %p332, %s33, 0
        %s334 = smul.addr %s333, 4
        %s335 = scalar_lea.vmem %s3, %s334
        %s336 = smul.u32 2, %s34
        %s337 = smul.u32 2, %s34
        %s338 = sld [smem:[#allocation2 + %s32]]
        %v339 = vld [vmem:[%s286] sm:$0xff]
        %v340 = vtanh.pop %v339
        %v341 = vld [vmem:[%s331] sm:$0xf]
        %343 = vset.pattern.permute.xlu0 0
        %344 = vperm.xlu0 %343, %v341
        %v345 = vpop.permute.xlu0 %344
        %v347 = vunpack.c.l.s4 839922192
        %v348 = vunpack.c.0.s8 %v347
        %v349 = vlaneseq
        %v350 = vshrl.u32 %v349, 7
        %v351 = vsub.s32 %v348, %v350
        %v352 = vrot.slane %v345, %v351
        %v354 = vmul.f32 %v340, %v352
        %v355 = vstv %s338
        %v356 = vadd.f32 %v354, %v355
        %357 = vst [vmem:[%s319] sm:$0xff] %v356
        %v358 = vld [vmem:[%s335] sm:$0xf]
        %360 = vset.pattern.permute.xlu0 0
        %361 = vperm.xlu0 %360, %v358
        %v362 = vpop.permute.xlu0 %361
        %v364 = vunpack.c.l.s4 839922192
        %v365 = vunpack.c.0.s8 %v364
        %v366 = vlaneseq
        %v367 = vshrl.u32 %v366, 7
        %v368 = vsub.s32 %v365, %v367
        %v369 = vrot.slane %v362, %v368
        %v371 = vmul.f32 %v340, %v369
        %v372 = vadd.f32 %v371, %v355
        %373 = vst [vmem:[%s326] sm:$0xff] %v372
        %s374 = sand.u32 %s161, 1
        %s375 = scalar_lea.sflag [#allocation4], %s374
        %s376 = sand.u32 %s161, 1
        %s377 = smul.addr %s376, 8
        %s378 = scalar_lea.vmem [#allocation7], %s377
        %s379 = sand.u32 %s191, 1
        %s380 = scalar_lea.sflag [#allocation9], %s379
        %s381 = sand.u32 %s191, 1
        %s382 = smul.addr %s381, 8
        %s383 = scalar_lea.vmem [#allocation8], %s382
        // Predicated region
        $region45: #{tpu_custom_call.1} parent=35 // pred_check
          %p384 = pneg %p171
        $region46: #{tpu_custom_call.1} parent=35 // pred_check_branch
          %386 = sbr.rel (%p384) target = $region48
        $region47: #{tpu_custom_call.1} parent=35 // pred_region
          %s387 = smul.u32 2, %s34
          %s389 = ssub.s32 128, 128
          %390 = vsyncadd %s375, %s389
          %s391 = smul.addr %s33, 2
          %s392 = sadd.s32 %s387, %s391
          %s393 = smul.addr %s32, 2
          %s394 = sadd.s32 %s392, %s393
          %s395 = smul.addr %s394, 64
          %s396 = scalar_lea.hbm %s4, %s395
          %s398 = sshll.u32 %s378, 4
          %s399 = int_to_ptr.vmem [resolvable:$true] %s398
          %401 = dma.vmem_to_hbm [thread:$0]  %s399, 128, %s396, %s375
        $region48: #{tpu_custom_call.1} parent=35 // pred_fallthru
          _
        // Predicated region
        $region49: #{tpu_custom_call.1} parent=35 // pred_check
          %p402 = pneg %p201
        $region50: #{tpu_custom_call.1} parent=35 // pred_check_branch
          %404 = sbr.rel (%p402) target = $region52
        $region51: #{tpu_custom_call.1} parent=35 // pred_region
          %s405 = smul.u32 2, %s34
          %s407 = ssub.s32 128, 128
          %408 = vsyncadd %s380, %s407
          %s409 = smul.addr %s33, 2
          %s410 = sadd.s32 %s405, %s409
          %s411 = smul.addr %s32, 2
          %s412 = sadd.s32 %s410, %s411
          %s413 = smul.addr %s412, 64
          %s414 = scalar_lea.hbm %s5, %s413
          %s416 = sshll.u32 %s383, 4
          %s417 = int_to_ptr.vmem [resolvable:$true] %s416
          %419 = dma.vmem_to_hbm [thread:$0]  %s417, 128, %s414, %s380
        $region52: #{tpu_custom_call.1} parent=35 // pred_fallthru
          _
      $region36: #{tpu_custom_call.1} parent=5 // pred_fallthru
        _
      %p420 = scmp.le.s32.totalorder 2, %s22
      // Predicated region
      $region53: #{tpu_custom_call.1} parent=5 // pred_check
        %p421 = pneg %p420
      $region54: #{tpu_custom_call.1} parent=5 // pred_check_branch
        %423 = sbr.rel (%p421) target = $region56
      $region55: #{tpu_custom_call.1} parent=5 // pred_region
        %s424 = ssub.s32 %s22, 2
        // Predicated region
        $region57: #{tpu_custom_call.1} parent=55 // pred_check
          %p425 = pneg %p177
        $region58: #{tpu_custom_call.1} parent=55 // pred_check_branch
          %427 = sbr.rel (%p425) target = $region60
        $region59: #{tpu_custom_call.1} parent=55 // pred_region
          %s428 = sand.u32 %s162, 1
          %s429 = scalar_lea.sflag [#allocation4], %s428
          %s430 = sand.u32 %s162, 1
          %s431 = smul.addr %s430, 8
          %s432 = scalar_lea.vmem [#allocation7], %s431
          %433 = dma.done %s429, 128
        $region60: #{tpu_custom_call.1} parent=55 // pred_fallthru
          _
        // Predicated region
        $region61: #{tpu_custom_call.1} parent=55 // pred_check
          %p434 = pneg %p207
        $region62: #{tpu_custom_call.1} parent=55 // pred_check_branch
          %436 = sbr.rel (%p434) target = $region64
        $region63: #{tpu_custom_call.1} parent=55 // pred_region
          %s437 = sand.u32 %s192, 1
          %s438 = scalar_lea.sflag [#allocation9], %s437
          %s439 = sand.u32 %s192, 1
          %s440 = smul.addr %s439, 8
          %s441 = scalar_lea.vmem [#allocation8], %s440
          %442 = dma.done %s438, 128
        $region64: #{tpu_custom_call.1} parent=55 // pred_fallthru
          _
      $region56: #{tpu_custom_call.1} parent=5 // pred_fallthru
        _
    $region6: #{tpu_custom_call.1} parent=1 // loop_footer
      %s26 = sadd.s32 1, %s22
    $region7: #{tpu_custom_call.1} parent=1 // loop_footer_branch
      %21 = sbr.rel target = $region3
    $region8: #{tpu_custom_call.1} parent=1 // loop_exit
      _
    %443 = vsyncpa [#allocation3], 1
    %s444 = scalar_lea.sflag [#allocation3], 1
    %445 = vsyncpa %s444, 1
    %446 = vsyncpa [#allocation4], 1
    %s447 = scalar_lea.sflag [#allocation4], 1
    %448 = vsyncpa %s447, 1
    %449 = vsyncpa [#allocation9], 1
    %s450 = scalar_lea.sflag [#allocation9], 1
    %451 = vsyncpa %s450, 1
    %452 = vsyncpa [#allocation5], 1
    %s453 = scalar_lea.sflag [#allocation5], 1
    %454 = vsyncpa %s453, 1

</llo_original>
